<compile_context>
chip_gen: v7x
topology: tpu7x:2x2x1
jax: 0.10.0
libtpu: 0.0.40
codegen_flags: <defaults>
</compile_context>

<pallas_src>
import jax
import jax.numpy as jnp
from jax import lax
from jax.experimental import pallas as pl
from jax.experimental.pallas import tpu as pltpu


def _dot_attention_kernel(x_ref, len_ref, w_ref, o_ref):
    x = x_ref[...].astype(jnp.float32)          # (BB, L, H) — single hoisted cast
    w = w_ref[...].astype(jnp.float32)          # (1, H)
    lens = len_ref[...]                         # (BB, 1) int32

    BB, L, H = x.shape

    # logits via VPU multiply + lane (H) reduce -> (BB, L)
    logits = jnp.sum(x * w.reshape(1, 1, H), axis=-1)

    # masked softmax over L, mask fused into one normalization
    m = jnp.max(logits, axis=-1, keepdims=True)            # (BB, 1)
    e = jnp.exp(logits - m)                                 # (BB, L)
    idx = lax.broadcasted_iota(jnp.int32, (BB, L), 1)
    masked = jnp.where(idx < lens, e, 0.0)                  # (BB, L)
    denom = jnp.sum(masked, axis=-1, keepdims=True)         # (BB, 1)
    # approx=False keeps the 1e-5 tolerance; this op is negligible anyway.
    alphas = masked * pl.reciprocal(denom, approx=False)    # (BB, L)

    # weighted sum over L: (BB, H)
    out = jnp.sum(alphas[:, :, None] * x, axis=1)
    o_ref[...] = out.astype(o_ref.dtype)


def dot_attention_layer(inputs, lengths, W, *, block_b=None):
    """inputs: (B, L, H), lengths: (B,) int, W: (1, H)  ->  (B, H)."""
    B, L, H = inputs.shape

    if block_b is None:
        itemsize = jnp.dtype(inputs.dtype).itemsize
        row_bytes = max(L * H * itemsize, 1)
        # keep one input tile around <= 4 MiB so double-buffering fits the
        # smallest scoped-VMEM default (v5e: 16 MiB), cap at 256 rows.
        by_vmem = max(8, (4 * 1024 * 1024) // row_bytes)
        block_b = min(256, by_vmem, -(-B // 8) * 8)
        block_b = max(8, (block_b // 8) * 8)

    b_pad = pl.cdiv(B, block_b) * block_b
    if b_pad != B:
        pad = b_pad - B
        inputs = jnp.pad(inputs, ((0, pad), (0, 0), (0, 0)))
        # padded rows get length 1 (their input rows are zero) -> no div-by-zero
        lengths = jnp.pad(lengths, ((0, pad),), constant_values=1)

    lengths2d = lengths.astype(jnp.int32).reshape(b_pad, 1)

    out = pl.pallas_call(
        _dot_attention_kernel,
        out_shape=jax.ShapeDtypeStruct((b_pad, H), inputs.dtype),
        grid_spec=pltpu.PrefetchScalarGridSpec(
            num_scalar_prefetch=0,
            grid=(b_pad // block_b,),
            in_specs=[
                pl.BlockSpec((block_b, L, H), lambda b: (b, 0, 0)),
                pl.BlockSpec((block_b, 1), lambda b: (b, 0)),
                pl.BlockSpec((1, H), lambda b: (0, 0)),
            ],
            out_specs=pl.BlockSpec((block_b, H), lambda b: (b, 0)),
        ),
        compiler_params=pltpu.CompilerParams(
            dimension_semantics=("parallel",),
            vmem_limit_bytes=32 * 1024 * 1024,
        ),
    )(inputs, lengths2d, W)
    return out[:B]


def _reference(inputs, lengths, W):
    B, L, H = inputs.shape
    logits = (inputs.reshape(-1, H) @ W.T).reshape(B, L)
    alphas = jax.nn.softmax(logits, axis=1)
    mask = (jnp.arange(L)[None, :] < lengths[:, None]).astype(jnp.float32)
    alphas = alphas * mask
    alphas = alphas / jnp.sum(alphas, axis=1, keepdims=True)
    return jnp.einsum("bl,blh->bh", alphas, inputs)


if __name__ == "__main__":
    key = jax.random.PRNGKey(0)
    k_x, k_w = jax.random.split(key)

    B, L, H = 2, 8, 32
    inputs = jax.random.normal(k_x, (B, L, H), dtype=jnp.float32)
    lengths = jnp.array([5, 8], dtype=jnp.int32)
    # nn.Linear(hidden_size, 1, bias=False) weight has shape (1, hidden_size)
    W = jax.random.normal(k_w, (1, H), dtype=jnp.float32) * (1.0 / (H ** 0.5))

    out = dot_attention_layer(inputs, lengths, W)
    jax.block_until_ready(out)

    ref = _reference(inputs, lengths, W)
    assert out.shape == (B, H)
    assert jnp.allclose(out, ref, atol=1e-5, rtol=1e-5), "mismatch vs reference"

    print("KERNEL_OK")
</pallas_src>

<mosaic_0001>
module attributes {stable_mosaic.version = 11 : i64} {
  func.func @_dot_attention_kernel(%arg0: i32, %arg1: memref<8x8x32xf32, #tpu.memory_space<vmem>>, %arg2: memref<8x1xi32, #tpu.memory_space<vmem>>, %arg3: memref<1x32xf32, #tpu.memory_space<vmem>>, %arg4: memref<8x32xf32, #tpu.memory_space<vmem>>) attributes {dimension_semantics = [#tpu.dimension_semantics<parallel>], iteration_bounds = array<i64: 1>, scalar_prefetch = 0 : i64, scratch_operands = 0 : i64, tpu.core_type = #tpu.core_type<tc>, window_params = [{transform_indices = @transform_0, window_bounds = array<i64: 8, 8, 32>}, {transform_indices = @transform_1, window_bounds = array<i64: 8, 1>}, {pipeline_mode = #tpu.pipeline_mode<synchronous>, transform_indices = @transform_2, window_bounds = array<i64: 1, 32>}, {transform_indices = @transform_3, window_bounds = array<i64: 8, 32>}]} {
    %c0 = arith.constant 0 : index
    %c0_0 = arith.constant 0 : index
    %c0_1 = arith.constant 0 : index
    %0 = vector.load %arg1[%c0, %c0_0, %c0_1] : memref<8x8x32xf32, #tpu.memory_space<vmem>>, vector<8x8x32xf32>
    %c0_2 = arith.constant 0 : index
    %c0_3 = arith.constant 0 : index
    %1 = vector.load %arg3[%c0_2, %c0_3] : memref<1x32xf32, #tpu.memory_space<vmem>>, vector<1x32xf32>
    %c0_4 = arith.constant 0 : index
    %c0_5 = arith.constant 0 : index
    %2 = vector.load %arg2[%c0_4, %c0_5] : memref<8x1xi32, #tpu.memory_space<vmem>>, vector<8x1xi32>
    %3 = vector.shape_cast %1 : vector<1x32xf32> to vector<1x1x32xf32>
    %4 = vector.broadcast %3 : vector<1x1x32xf32> to vector<8x8x32xf32>
    %5 = arith.mulf %0, %4 : vector<8x8x32xf32>
    %cst = arith.constant dense<0.000000e+00> : vector<8x8xf32>
    %6 = vector.multi_reduction <add>, %5, %cst [2] : vector<8x8x32xf32> to vector<8x8xf32>
    %cst_6 = arith.constant dense<0xFF800000> : vector<8xf32>
    %7 = vector.multi_reduction <maximumf>, %6, %cst_6 [1] : vector<8x8xf32> to vector<8xf32>
    %8 = vector.shape_cast %7 : vector<8xf32> to vector<8x1xf32>
    %9 = vector.broadcast %8 : vector<8x1xf32> to vector<8x8xf32>
    %10 = arith.subf %6, %9 : vector<8x8xf32>
    %11 = math.exp %10 : vector<8x8xf32>
    %12 = tpu.iota {dimensions = array<i32: 1>} : vector<8x8xi32>
    %13 = vector.broadcast %2 : vector<8x1xi32> to vector<8x8xi32>
    %14 = arith.cmpi slt, %12, %13 : vector<8x8xi32>
    %cst_7 = arith.constant 0.000000e+00 : f32
    %15 = vector.broadcast %cst_7 : f32 to vector<8x8xf32>
    %16 = arith.select %14, %11, %15 : vector<8x8xi1>, vector<8x8xf32>
    %cst_8 = arith.constant dense<0.000000e+00> : vector<8xf32>
    %17 = vector.multi_reduction <add>, %16, %cst_8 [1] : vector<8x8xf32> to vector<8xf32>
    %18 = vector.shape_cast %17 : vector<8xf32> to vector<8x1xf32>
    %19 = tpu.reciprocal %18 : vector<8x1xf32> -> vector<8x1xf32>
    %20 = vector.broadcast %19 : vector<8x1xf32> to vector<8x8xf32>
    %21 = arith.mulf %16, %20 : vector<8x8xf32>
    %22 = vector.shape_cast %21 : vector<8x8xf32> to vector<8x8x1xf32>
    %23 = vector.broadcast %22 : vector<8x8x1xf32> to vector<8x8x32xf32>
    %24 = arith.mulf %23, %0 : vector<8x8x32xf32>
    %cst_9 = arith.constant dense<0.000000e+00> : vector<8x32xf32>
    %25 = vector.multi_reduction <add>, %24, %cst_9 [1] : vector<8x8x32xf32> to vector<8x32xf32>
    %c0_10 = arith.constant 0 : index
    %c0_11 = arith.constant 0 : index
    %26 = vector.load %arg4[%c0_10, %c0_11] : memref<8x32xf32, #tpu.memory_space<vmem>>, vector<8x32xf32>
    tpu.vector_store %arg4[%c0_10, %c0_11], %25 {strides = array<i32>} : memref<8x32xf32, #tpu.memory_space<vmem>>, vector<8x32xf32>,
    return
  }
  func.func @transform_0(%arg0: i32) -> (i32, i32, i32) {
    %c0_i32 = arith.constant 0 : i32
    %c0_i32_0 = arith.constant 0 : i32
    %c0_i32_1 = arith.constant 0 : i32
    return %arg0, %c0_i32, %c0_i32_0 : i32, i32, i32
  }
  func.func @transform_1(%arg0: i32) -> (i32, i32) {
    %c0_i32 = arith.constant 0 : i32
    %c0_i32_0 = arith.constant 0 : i32
    return %arg0, %c0_i32 : i32, i32
  }
  func.func @transform_2(%arg0: i32) -> (i32, i32) {
    %c0_i32 = arith.constant 0 : i32
    %c0_i32_0 = arith.constant 0 : i32
    %c0_i32_1 = arith.constant 0 : i32
    return %c0_i32, %c0_i32_0 : i32, i32
  }
  func.func @transform_3(%arg0: i32) -> (i32, i32) {
    %c0_i32 = arith.constant 0 : i32
    %c0_i32_0 = arith.constant 0 : i32
    return %arg0, %c0_i32 : i32, i32
  }
}

</mosaic_0001>

<llo_original>
// kernel: tpu_custom_call.1
$region0: #{tpu_custom_call.1}
  #allocation0 [shape = 'u32[]', space=smem, size = 0x4, offset = 0x4, fixed_abs, tag = 'smem constant byte address 0x4 - core index']
  #allocation1 [shape = 'u32[144,128]{1,0:T(1,128)}', space=vmem, size = 0x12000, scoped, tag = 'internal scratch']
  %s0 = inlined_call_operand.hbm [shape: f32[8,8,32], index: 0, kind: input, shape index: {}]
  %s1 = inlined_call_operand.vmem [shape: s32[8,1], index: 1, kind: input, shape index: {}]
  %s2 = inlined_call_operand.vmem [shape: f32[1,32], index: 2, kind: input, shape index: {}]
  %s3 = inlined_call_operand.hbm [shape: f32[8,32], index: 3, kind: output, shape index: {}]
  %s4 = sld [smem:[#allocation0]]
  $region26: #{tpu_custom_call.1} parent=0
    _
  %s6 = ssub.s32 1, %s4
  %s7 = scalar_select 0, %s6, %s4
  $region1: #{tpu_custom_call.1} parent=0
    #allocation2 [shape = 'u8[32768]{0}', space=vmem, size = 0x8000, scoped, tag = 'input window, operand 0, single buffered']
    #allocation3 [shape = 's32[1]{0}', space=sflag, size = 0x4, scoped, tag = 'scoped memory for tpu_custom_call.1']
    #allocation4 [shape = 's32[1]{0}', space=sflag, size = 0x4, scoped, tag = 'scoped memory for tpu_custom_call.1']
    #allocation5 [shape = 'u8[4096]{0}', space=vmem, size = 0x1000, scoped, tag = 'output window, operand 0, single buffered']
    %8 = vsyncpa [#allocation3], 0
    %9 = vsyncpa [#allocation4], 0
    // Predicated region
    $region2: #{tpu_custom_call.1} parent=1 // pred_check
      _
    $region3: #{tpu_custom_call.1} parent=1 // pred_check_branch
      %11 = sbr.rel (0) target = $region5
    $region4: #{tpu_custom_call.1} parent=1 // pred_region
      %s13 = ssub.s32 1024, 1024
      %14 = vsyncadd [#allocation3], %s13
      %s15 = sshll.u32 [#allocation2], 4
      %s16 = int_to_ptr.vmem [resolvable:$true] %s15
      %21 = dma.hbm_to_vmem [thread:$0]  %s0, 1024, %s16, [#allocation3], 128, 128, 8
    $region5: #{tpu_custom_call.1} parent=1 // pred_fallthru
      _
    // Predicated region
    $region6: #{tpu_custom_call.1} parent=1 // pred_check
      _
    $region7: #{tpu_custom_call.1} parent=1 // pred_check_branch
      %23 = sbr.rel (0) target = $region9
    $region8: #{tpu_custom_call.1} parent=1 // pred_region
      _
    $region9: #{tpu_custom_call.1} parent=1 // pred_fallthru
      _
    // Predicated region
    $region10: #{tpu_custom_call.1} parent=1 // pred_check
      _
    $region11: #{tpu_custom_call.1} parent=1 // pred_check_branch
      %25 = sbr.rel (0) target = $region13
    $region12: #{tpu_custom_call.1} parent=1 // pred_region
      _
    $region13: #{tpu_custom_call.1} parent=1 // pred_fallthru
      _
    // Predicated region
    $region14: #{tpu_custom_call.1} parent=1 // pred_check
      _
    $region15: #{tpu_custom_call.1} parent=1 // pred_check_branch
      %27 = sbr.rel (0) target = $region17
    $region16: #{tpu_custom_call.1} parent=1 // pred_region
      %28 = dma.done [#allocation3], 1024
    $region17: #{tpu_custom_call.1} parent=1 // pred_fallthru
      _
    %v29 = vld [vmem:[#allocation2] sm:$0xff]
    %v30 = vld [vmem:[#allocation2 + $0x8] sm:$0xff]
    %v31 = vld [vmem:[#allocation2 + $0x10] sm:$0xff]
    %v32 = vld [vmem:[#allocation2 + $0x18] sm:$0xff]
    %v33 = vld [vmem:[#allocation2 + $0x20] sm:$0xff]
    %v34 = vld [vmem:[#allocation2 + $0x28] sm:$0xff]
    %v35 = vld [vmem:[#allocation2 + $0x30] sm:$0xff]
    %v36 = vld [vmem:[#allocation2 + $0x38] sm:$0xff]
    %v37 = vld [vmem:[%s2] sm:$0x1]
    %v38 = vld [vmem:[%s1] sm:$0xff]
    %v40 = vlaneseq
    %v41 = vshrl.u32 %v40, 7
    %v42 = vsub.s32 0, %v41
    %v43 = vrot.slane %v37, %v42
    %v45 = vmul.f32 %v29, %v43
    %v46 = vmul.f32 %v30, %v43
    %v47 = vmul.f32 %v31, %v43
    %v48 = vmul.f32 %v32, %v43
    %v49 = vmul.f32 %v33, %v43
    %v50 = vmul.f32 %v34, %v43
    %v51 = vmul.f32 %v35, %v43
    %v52 = vmul.f32 %v36, %v43
    %vm53 = vcmask 261120
    %v54 = vsel %vm53, %v45, 0.0
    %55 = vadd.xlane.f32.xlu0 %v54
    %v56 = vpop.xlane.xlu0 %55
    %v57 = vsel %vm53, %v46, 0.0
    %58 = vadd.xlane.f32.xlu0 %v57
    %v59 = vpop.xlane.xlu0 %58
    %v60 = vsel %vm53, %v47, 0.0
    %61 = vadd.xlane.f32.xlu0 %v60
    %v62 = vpop.xlane.xlu0 %61
    %v63 = vsel %vm53, %v48, 0.0
    %64 = vadd.xlane.f32.xlu0 %v63
    %v65 = vpop.xlane.xlu0 %64
    %v66 = vsel %vm53, %v49, 0.0
    %67 = vadd.xlane.f32.xlu0 %v66
    %v68 = vpop.xlane.xlu0 %67
    %v69 = vsel %vm53, %v50, 0.0
    %70 = vadd.xlane.f32.xlu0 %v69
    %v71 = vpop.xlane.xlu0 %70
    %v72 = vsel %vm53, %v51, 0.0
    %73 = vadd.xlane.f32.xlu0 %v72
    %v74 = vpop.xlane.xlu0 %73
    %v75 = vsel %vm53, %v52, 0.0
    %76 = vadd.xlane.f32.xlu0 %v75
    %v77 = vpop.xlane.xlu0 %76
    %v86 = vlaneseq
    %v87 = vand.u32 %v86, 127
    %v88 = vlaneseq
    %v89 = vshrl.u32 %v88, 7
    %v90 = vsub.s32 %v87, %v89
    %v91 = vrot.slane %v56, %v90
    %v92 = vlaneseq
    %v93 = vshrl.u32 %v92, 7
    %v94 = vsub.s32 %v87, %v93
    %v95 = vrot.slane %v59, %v94
    %v96 = vlaneseq
    %v97 = vshrl.u32 %v96, 7
    %v98 = vsub.s32 %v87, %v97
    %v99 = vrot.slane %v62, %v98
    %v100 = vlaneseq
    %v101 = vshrl.u32 %v100, 7
    %v102 = vsub.s32 %v87, %v101
    %v103 = vrot.slane %v65, %v102
    %v104 = vlaneseq
    %v105 = vshrl.u32 %v104, 7
    %v106 = vsub.s32 %v87, %v105
    %v107 = vrot.slane %v68, %v106
    %v108 = vlaneseq
    %v109 = vshrl.u32 %v108, 7
    %v110 = vsub.s32 %v87, %v109
    %v111 = vrot.slane %v71, %v110
    %v112 = vlaneseq
    %v113 = vshrl.u32 %v112, 7
    %v114 = vsub.s32 %v87, %v113
    %v115 = vrot.slane %v74, %v114
    %v116 = vlaneseq
    %v117 = vshrl.u32 %v116, 7
    %v118 = vsub.s32 %v87, %v117
    %v119 = vrot.slane %v77, %v118
    %vm120 = vcmask 1041409
    %v121 = vsel %vm120, %v95, %v91
    %vm122 = vcmask 1042434
    %v123 = vsel %vm122, %v99, %v121
    %vm124 = vcmask 1043459
    %v125 = vsel %vm124, %v103, %v123
    %vm126 = vcmask 1044484
    %v127 = vsel %vm126, %v107, %v125
    %vm128 = vcmask 1045509
    %v129 = vsel %vm128, %v111, %v127
    %vm130 = vcmask 1046534
    %v131 = vsel %vm130, %v115, %v129
    %vm132 = vcmask 1047559
    %v133 = vsel %vm132, %v119, %v131
    %vm135 = vcmask 64512
    %v136 = vsel %vm135, %v133, -inf
    %137 = vmax.xlane.f32.xlu0 %v136
    %v138 = vpop.xlane.xlu0 %137
    %v140 = vlaneseq
    %v141 = vshrl.u32 %v140, 7
    %v142 = vsub.s32 0, %v141
    %v143 = vrot.slane %v138, %v142
    %v144 = vlaneseq
    %v145 = vshrl.u32 %v144, 7
    %v146 = vsub.s32 1, %v145
    %v147 = vrot.slane %v138, %v146
    %v148 = vlaneseq
    %v149 = vshrl.u32 %v148, 7
    %v150 = vsub.s32 2, %v149
    %v151 = vrot.slane %v138, %v150
    %v152 = vlaneseq
    %v153 = vshrl.u32 %v152, 7
    %v154 = vsub.s32 3, %v153
    %v155 = vrot.slane %v138, %v154
    %v156 = vlaneseq
    %v157 = vshrl.u32 %v156, 7
    %v158 = vsub.s32 4, %v157
    %v159 = vrot.slane %v138, %v158
    %v160 = vlaneseq
    %v161 = vshrl.u32 %v160, 7
    %v162 = vsub.s32 5, %v161
    %v163 = vrot.slane %v138, %v162
    %v164 = vlaneseq
    %v165 = vshrl.u32 %v164, 7
    %v166 = vsub.s32 6, %v165
    %v167 = vrot.slane %v138, %v166
    %v168 = vlaneseq
    %v169 = vshrl.u32 %v168, 7
    %v170 = vsub.s32 7, %v169
    %v171 = vrot.slane %v138, %v170
    %v180 = vsub.f32 %v56, %v143
    %v181 = vsub.f32 %v59, %v147
    %v182 = vsub.f32 %v62, %v151
    %v183 = vsub.f32 %v65, %v155
    %v184 = vsub.f32 %v68, %v159
    %v185 = vsub.f32 %v71, %v163
    %v186 = vsub.f32 %v74, %v167
    %v187 = vsub.f32 %v77, %v171
    %v188 = vmul.f32 %v180, 1.442695
    %v189 = vpow.pop %v188
    %v190 = vmul.f32 %v181, 1.442695
    %v191 = vpow.pop %v190
    %v192 = vmul.f32 %v182, 1.442695
    %v193 = vpow.pop %v192
    %v194 = vmul.f32 %v183, 1.442695
    %v195 = vpow.pop %v194
    %v196 = vmul.f32 %v184, 1.442695
    %v197 = vpow.pop %v196
    %v198 = vmul.f32 %v185, 1.442695
    %v199 = vpow.pop %v198
    %v200 = vmul.f32 %v186, 1.442695
    %v201 = vpow.pop %v200
    %v202 = vmul.f32 %v187, 1.442695
    %v203 = vpow.pop %v202
    %204 = vset.pattern.permute.xlu0 0
    %205 = vperm.xlu0 %204, %v38
    %v206 = vpop.permute.xlu0 %205
    %vm207 = vcmp.lt.s32.totalorder %v87, %v206
    %216 = vset.pattern.permute.xlu0 0
    %217 = vperm.xlu0 %216, %v189
    %v218 = vpop.permute.xlu0 %217
    %219 = vset.pattern.permute.xlu0 0
    %220 = vperm.xlu0 %219, %v191
    %v221 = vpop.permute.xlu0 %220
    %222 = vset.pattern.permute.xlu0 0
    %223 = vperm.xlu0 %222, %v193
    %v224 = vpop.permute.xlu0 %223
    %225 = vset.pattern.permute.xlu0 0
    %226 = vperm.xlu0 %225, %v195
    %v227 = vpop.permute.xlu0 %226
    %228 = vset.pattern.permute.xlu0 0
    %229 = vperm.xlu0 %228, %v197
    %v230 = vpop.permute.xlu0 %229
    %231 = vset.pattern.permute.xlu0 0
    %232 = vperm.xlu0 %231, %v199
    %v233 = vpop.permute.xlu0 %232
    %234 = vset.pattern.permute.xlu0 0
    %235 = vperm.xlu0 %234, %v201
    %v236 = vpop.permute.xlu0 %235
    %237 = vset.pattern.permute.xlu0 0
    %238 = vperm.xlu0 %237, %v203
    %v239 = vpop.permute.xlu0 %238
    %v240 = vlaneseq
    %v241 = vshrl.u32 %v240, 7
    %v242 = vsub.s32 %v87, %v241
    %v243 = vrot.slane %v218, %v242
    %v244 = vlaneseq
    %v245 = vshrl.u32 %v244, 7
    %v246 = vsub.s32 %v87, %v245
    %v247 = vrot.slane %v221, %v246
    %v248 = vlaneseq
    %v249 = vshrl.u32 %v248, 7
    %v250 = vsub.s32 %v87, %v249
    %v251 = vrot.slane %v224, %v250
    %v252 = vlaneseq
    %v253 = vshrl.u32 %v252, 7
    %v254 = vsub.s32 %v87, %v253
    %v255 = vrot.slane %v227, %v254
    %v256 = vlaneseq
    %v257 = vshrl.u32 %v256, 7
    %v258 = vsub.s32 %v87, %v257
    %v259 = vrot.slane %v230, %v258
    %v260 = vlaneseq
    %v261 = vshrl.u32 %v260, 7
    %v262 = vsub.s32 %v87, %v261
    %v263 = vrot.slane %v233, %v262
    %v264 = vlaneseq
    %v265 = vshrl.u32 %v264, 7
    %v266 = vsub.s32 %v87, %v265
    %v267 = vrot.slane %v236, %v266
    %v268 = vlaneseq
    %v269 = vshrl.u32 %v268, 7
    %v270 = vsub.s32 %v87, %v269
    %v271 = vrot.slane %v239, %v270
    %v272 = vsel %vm120, %v247, %v243
    %v273 = vsel %vm122, %v251, %v272
    %v274 = vsel %vm124, %v255, %v273
    %v275 = vsel %vm126, %v259, %v274
    %v276 = vsel %vm128, %v263, %v275
    %v277 = vsel %vm130, %v267, %v276
    %v278 = vsel %vm132, %v271, %v277
    %v280 = vsel %vm207, %v278, 0.0
    %v281 = vsel %vm135, %v280, 0.0
    %282 = vadd.xlane.f32.xlu0 %v281
    %v283 = vpop.xlane.xlu0 %282
    %v284 = vrcp.pop %v283
    %v285 = vmul.f32 %v280, %v284
    %v286 = vlaneseq
    %v287 = vshrl.u32 %v286, 7
    %v288 = vsub.s32 0, %v287
    %v289 = vrot.slane %v285, %v288
    %291 = vbcast.lane.b32.xlu0 %v289, 256
    %v292 = vpop.permute.xlu0 %291
    %v293 = vlaneseq
    %v294 = vshrl.u32 %v293, 7
    %v295 = vsub.s32 1, %v294
    %v296 = vrot.slane %v285, %v295
    %298 = vbcast.lane.b32.xlu0 %v296, 256
    %v299 = vpop.permute.xlu0 %298
    %v300 = vlaneseq
    %v301 = vshrl.u32 %v300, 7
    %v302 = vsub.s32 2, %v301
    %v303 = vrot.slane %v285, %v302
    %305 = vbcast.lane.b32.xlu0 %v303, 256
    %v306 = vpop.permute.xlu0 %305
    %v307 = vlaneseq
    %v308 = vshrl.u32 %v307, 7
    %v309 = vsub.s32 3, %v308
    %v310 = vrot.slane %v285, %v309
    %312 = vbcast.lane.b32.xlu0 %v310, 256
    %v313 = vpop.permute.xlu0 %312
    %v314 = vlaneseq
    %v315 = vshrl.u32 %v314, 7
    %v316 = vsub.s32 4, %v315
    %v317 = vrot.slane %v285, %v316
    %319 = vbcast.lane.b32.xlu0 %v317, 256
    %v320 = vpop.permute.xlu0 %319
    %v321 = vlaneseq
    %v322 = vshrl.u32 %v321, 7
    %v323 = vsub.s32 5, %v322
    %v324 = vrot.slane %v285, %v323
    %326 = vbcast.lane.b32.xlu0 %v324, 256
    %v327 = vpop.permute.xlu0 %326
    %v328 = vlaneseq
    %v329 = vshrl.u32 %v328, 7
    %v330 = vsub.s32 6, %v329
    %v331 = vrot.slane %v285, %v330
    %333 = vbcast.lane.b32.xlu0 %v331, 256
    %v334 = vpop.permute.xlu0 %333
    %v335 = vlaneseq
    %v336 = vshrl.u32 %v335, 7
    %v337 = vsub.s32 7, %v336
    %v338 = vrot.slane %v285, %v337
    %340 = vbcast.lane.b32.xlu0 %v338, 256
    %v341 = vpop.permute.xlu0 %340
    %v342 = vmul.f32 %v292, %v29
    %v343 = vmul.f32 %v299, %v30
    %v344 = vmul.f32 %v306, %v31
    %v345 = vmul.f32 %v313, %v32
    %v346 = vmul.f32 %v320, %v33
    %v347 = vmul.f32 %v327, %v34
    %v348 = vmul.f32 %v334, %v35
    %v349 = vmul.f32 %v341, %v36
    %v350 = vsel %vm53, %v342, 0.0
    %v351 = vrot.slane %v350, 4
    %v352 = vadd.f32 %v350, %v351
    %v353 = vrot.slane %v352, 2
    %v354 = vadd.f32 %v352, %v353
    %v355 = vrot.slane %v354, 1
    %v356 = vadd.f32 %v354, %v355
    %v357 = vsel %vm53, %v343, 0.0
    %v358 = vrot.slane %v357, 4
    %v359 = vadd.f32 %v357, %v358
    %v360 = vrot.slane %v359, 2
    %v361 = vadd.f32 %v359, %v360
    %v362 = vrot.slane %v361, 1
    %v363 = vadd.f32 %v361, %v362
    %v364 = vsel %vm53, %v344, 0.0
    %v365 = vrot.slane %v364, 4
    %v366 = vadd.f32 %v364, %v365
    %v367 = vrot.slane %v366, 2
    %v368 = vadd.f32 %v366, %v367
    %v369 = vrot.slane %v368, 1
    %v370 = vadd.f32 %v368, %v369
    %v371 = vsel %vm53, %v345, 0.0
    %v372 = vrot.slane %v371, 4
    %v373 = vadd.f32 %v371, %v372
    %v374 = vrot.slane %v373, 2
    %v375 = vadd.f32 %v373, %v374
    %v376 = vrot.slane %v375, 1
    %v377 = vadd.f32 %v375, %v376
    %v378 = vsel %vm53, %v346, 0.0
    %v379 = vrot.slane %v378, 4
    %v380 = vadd.f32 %v378, %v379
    %v381 = vrot.slane %v380, 2
    %v382 = vadd.f32 %v380, %v381
    %v383 = vrot.slane %v382, 1
    %v384 = vadd.f32 %v382, %v383
    %v385 = vsel %vm53, %v347, 0.0
    %v386 = vrot.slane %v385, 4
    %v387 = vadd.f32 %v385, %v386
    %v388 = vrot.slane %v387, 2
    %v389 = vadd.f32 %v387, %v388
    %v390 = vrot.slane %v389, 1
    %v391 = vadd.f32 %v389, %v390
    %v392 = vsel %vm53, %v348, 0.0
    %v393 = vrot.slane %v392, 4
    %v394 = vadd.f32 %v392, %v393
    %v395 = vrot.slane %v394, 2
    %v396 = vadd.f32 %v394, %v395
    %v397 = vrot.slane %v396, 1
    %v398 = vadd.f32 %v396, %v397
    %v399 = vsel %vm53, %v349, 0.0
    %v400 = vrot.slane %v399, 4
    %v401 = vadd.f32 %v399, %v400
    %v402 = vrot.slane %v401, 2
    %v403 = vadd.f32 %v401, %v402
    %v404 = vrot.slane %v403, 1
    %v405 = vadd.f32 %v403, %v404
    %v414 = vsel %vm120, %v363, %v356
    %v415 = vsel %vm122, %v370, %v414
    %v416 = vsel %vm124, %v377, %v415
    %v417 = vsel %vm126, %v384, %v416
    %v418 = vsel %vm128, %v391, %v417
    %v419 = vsel %vm130, %v398, %v418
    %v420 = vsel %vm132, %v405, %v419
    %422 = vst.msk [vmem:[#allocation5] sm:$0xff] %vm53, %v420
    // Predicated region
    $region18: #{tpu_custom_call.1} parent=1 // pred_check
      _
    $region19: #{tpu_custom_call.1} parent=1 // pred_check_branch
      %424 = sbr.rel (0) target = $region21
    $region20: #{tpu_custom_call.1} parent=1 // pred_region
      %s426 = ssub.s32 128, 128
      %427 = vsyncadd [#allocation4], %s426
      %s429 = sshll.u32 [#allocation5], 4
      %s430 = int_to_ptr.vmem [resolvable:$true] %s429
      %432 = dma.vmem_to_hbm [thread:$0]  %s430, 128, %s3, [#allocation4]
    $region21: #{tpu_custom_call.1} parent=1 // pred_fallthru
      _
    // Predicated region
    $region22: #{tpu_custom_call.1} parent=1 // pred_check
      _
    $region23: #{tpu_custom_call.1} parent=1 // pred_check_branch
      %434 = sbr.rel (0) target = $region25
    $region24: #{tpu_custom_call.1} parent=1 // pred_region
      %435 = dma.done [#allocation4], 128
    $region25: #{tpu_custom_call.1} parent=1 // pred_fallthru
      _
    %436 = vsyncpa [#allocation3], 1
    %437 = vsyncpa [#allocation4], 1

</llo_original>
